<compile_context>
chip_gen: v7x
topology: tpu7x:2x2x1
jax: 0.10.0
libtpu: 0.0.40
codegen_flags: <defaults>
</compile_context>

<pallas_src>
import jax
import jax.numpy as jnp
from jax.experimental import pallas as pl
from jax.experimental.pallas import tpu as pltpu

_HP = 128   # padded hidden size (lane width)
_AP = 128   # padded action size (lane width) -> lane-dense output stores


def _round_up(x, m):
    return (x + m - 1) // m * m


def _make_dqn_kernel(sigma: float, hp: int):
    # Static row offsets inside the packed parameter slab.
    r_w2 = 0
    r_w3 = hp
    r_w1, r_b1, r_b2, r_b3, r_fr, r_ph = (2 * hp + k for k in range(6))

    def dqn_kernel(s_ref, p_ref, o_ref):
        s = s_ref[...]                                    # [TB, 1]
        w1 = p_ref[r_w1:r_w1 + 1, :]                      # [1, 128]
        b1 = p_ref[r_b1:r_b1 + 1, :]
        b2 = p_ref[r_b2:r_b2 + 1, :]
        b3 = p_ref[r_b3:r_b3 + 1, :]

        # linear1: in_features == 1, so x @ W1 is an outer product (VPU only).
        h1 = jnp.maximum(s * w1 + b1, 0.0)                # [TB, 128]

        # linear2: lane-dense [TB,128] @ [128,128] on the MXU.
        h2 = jnp.dot(h1, p_ref[r_w2:r_w2 + hp, :],
                     preferred_element_type=jnp.float32) + b2
        h2 = jnp.maximum(h2, 0.0)

        # head: [TB,128] @ [128,128] (action dim zero-padded to 128).
        q = jnp.dot(h2, p_ref[r_w3:r_w3 + hp, :],
                    preferred_element_type=jnp.float32) + b3

        if sigma > 0:
            freq = p_ref[r_fr:r_fr + 1, :]
            phase = p_ref[r_ph:r_ph + 1, :]
            q = q + sigma * jnp.sin(s * freq + phase)     # padded cols -> 0

        o_ref[...] = q                                    # lane-dense store

    return dqn_kernel


def pack_params(params, hidden, action_space):
    """Pack all weights/biases/noise params into one [2*HP+8, 128] f32 slab.

    Zero padding guarantees padded hidden/action columns stay exactly zero
    through ReLU, both matmuls, and the sin noise term.
    """
    w1, b1, w2, b2, w3, b3, freq, phase = params
    hp, ap = _HP, _AP
    slab = jnp.zeros((2 * hp + 8, ap), jnp.float32)
    slab = slab.at[0:hidden, 0:hidden].set(w2)                  # rows [0, HP)
    slab = slab.at[hp:hp + hidden, 0:action_space].set(w3)      # rows [HP, 2HP)
    slab = slab.at[2 * hp + 0, 0:hidden].set(w1[0])
    slab = slab.at[2 * hp + 1, 0:hidden].set(b1[0])
    slab = slab.at[2 * hp + 2, 0:hidden].set(b2[0])
    slab = slab.at[2 * hp + 3, 0:action_space].set(b3[0])
    slab = slab.at[2 * hp + 4, 0:action_space].set(freq[0])
    slab = slab.at[2 * hp + 5, 0:action_space].set(phase[0])
    return slab


def dqn_forward(s, packed, action_space, sigma=0.4):
    """s: [B, 1] f32, packed: [2*HP+8, 128] f32 -> [B, action_space] f32."""
    B = s.shape[0]
    hp = (packed.shape[0] - 8) // 2

    # Batch tile: big lane/sublane-aligned tiles at large B, minimal pad at
    # small B.  Footprint per step ~ TB*(1+3*128)*4 B << VMEM on all chips.
    TB = 256 if B >= 256 else _round_up(max(B, 1), 8)
    B_pad = _round_up(B, TB)
    if B_pad != B:
        s = jnp.pad(s, ((0, B_pad - B), (0, 0)))

    out = pl.pallas_call(
        _make_dqn_kernel(float(sigma), hp),
        out_shape=jax.ShapeDtypeStruct((B_pad, _AP), jnp.float32),
        grid_spec=pltpu.PrefetchScalarGridSpec(
            num_scalar_prefetch=0,
            grid=(B_pad // TB,),
            in_specs=[
                pl.BlockSpec((TB, 1), lambda i: (i, 0)),          # states
                pl.BlockSpec((2 * hp + 8, _AP), lambda i: (0, 0)),  # weights (VMEM-resident)
            ],
            out_specs=pl.BlockSpec((TB, _AP), lambda i: (i, 0)),
        ),
        compiler_params=pltpu.CompilerParams(
            dimension_semantics=("parallel",)),   # shard batch axis over TCs (v7x)
    )(s, packed)

    return out[:B, :action_space]


def init_params(key, hidden=16, action_space=4):
    """Deterministic synthetic parameter init (uniform, PyTorch-ish ranges)."""
    ks = jax.random.split(key, 8)

    def unif(k, shape, fan_in):
        bound = 1.0 / jnp.sqrt(jnp.array(fan_in, jnp.float32))
        return jax.random.uniform(k, shape, jnp.float32, -bound, bound)

    # Stored as (in, out); biases kept 2-D [1, out].
    w1 = unif(ks[0], (1, hidden), 1)
    b1 = unif(ks[1], (1, hidden), 1)
    w2 = unif(ks[2], (hidden, hidden), hidden)
    b2 = unif(ks[3], (1, hidden), hidden)
    w3 = unif(ks[4], (hidden, action_space), hidden)
    b3 = unif(ks[5], (1, action_space), hidden)
    # Deterministic surrogate noisebuffer parameters.
    freq = jax.random.uniform(ks[6], (1, action_space), jnp.float32, 0.5, 2.0)
    phase = jax.random.uniform(ks[7], (1, action_space), jnp.float32,
                               0.0, 2.0 * jnp.pi)
    return (w1, b1, w2, b2, w3, b3, freq, phase)


def dqn_reference(s, params, sigma=0.4):
    """Plain-JAX reference of the same forward (unpadded), for sanity check."""
    w1, b1, w2, b2, w3, b3, freq, phase = params
    h1 = jnp.maximum(s @ w1 + b1, 0.0)
    h2 = jnp.maximum(h1 @ w2 + b2, 0.0)
    q = h2 @ w3 + b3
    if sigma > 0:
        q = q + sigma * jnp.sin(s * freq + phase)
    return q


if __name__ == "__main__":
    key = jax.random.PRNGKey(0)
    k_param, k_state = jax.random.split(key)

    hidden = 16
    action_space = 4
    batch = 8
    sigma = 0.4

    params = init_params(k_param, hidden=hidden, action_space=action_space)
    packed = pack_params(params, hidden, action_space)   # one-time packing

    # States: [B, 1] float32 (each row a scalar environment state).
    s = jax.random.uniform(k_state, (batch, 1), jnp.float32, -2.0, 2.0)

    out = dqn_forward(s, packed, action_space, sigma=sigma)
    out = jax.block_until_ready(out)

    ref = dqn_reference(s, params, sigma=sigma)
    assert out.shape == (batch, action_space)
    assert jnp.allclose(out, ref, atol=1e-5, rtol=1e-5)

    print("KERNEL_OK")
</pallas_src>

<mosaic_0001>
module attributes {stable_mosaic.version = 11 : i64} {
  func.func @dqn_kernel(%arg0: i32, %arg1: memref<8x1xf32, #tpu.memory_space<vmem>>, %arg2: memref<264x128xf32, #tpu.memory_space<vmem>>, %arg3: memref<8x128xf32, #tpu.memory_space<vmem>>) attributes {dimension_semantics = [#tpu.dimension_semantics<parallel>], iteration_bounds = array<i64: 1>, scalar_prefetch = 0 : i64, scratch_operands = 0 : i64, tpu.core_type = #tpu.core_type<tc>, window_params = [{transform_indices = @transform_0, window_bounds = array<i64: 8, 1>}, {pipeline_mode = #tpu.pipeline_mode<synchronous>, transform_indices = @transform_1, window_bounds = array<i64: 264, 128>}, {transform_indices = @transform_2, window_bounds = array<i64: 8, 128>}]} {
    %c0 = arith.constant 0 : index
    %c0_0 = arith.constant 0 : index
    %0 = vector.load %arg1[%c0, %c0_0] : memref<8x1xf32, #tpu.memory_space<vmem>>, vector<8x1xf32>
    %c256 = arith.constant 256 : index
    %c0_1 = arith.constant 0 : index
    %1 = vector.load %arg2[%c256, %c0_1] : memref<264x128xf32, #tpu.memory_space<vmem>>, vector<1x128xf32>
    %c257 = arith.constant 257 : index
    %c0_2 = arith.constant 0 : index
    %2 = vector.load %arg2[%c257, %c0_2] : memref<264x128xf32, #tpu.memory_space<vmem>>, vector<1x128xf32>
    %c258 = arith.constant 258 : index
    %c0_3 = arith.constant 0 : index
    %3 = vector.load %arg2[%c258, %c0_3] : memref<264x128xf32, #tpu.memory_space<vmem>>, vector<1x128xf32>
    %c259 = arith.constant 259 : index
    %c0_4 = arith.constant 0 : index
    %4 = vector.load %arg2[%c259, %c0_4] : memref<264x128xf32, #tpu.memory_space<vmem>>, vector<1x128xf32>
    %5 = vector.broadcast %0 : vector<8x1xf32> to vector<8x128xf32>
    %6 = vector.broadcast %1 : vector<1x128xf32> to vector<8x128xf32>
    %7 = arith.mulf %5, %6 : vector<8x128xf32>
    %8 = vector.broadcast %2 : vector<1x128xf32> to vector<8x128xf32>
    %9 = arith.addf %7, %8 : vector<8x128xf32>
    %cst = arith.constant 0.000000e+00 : f32
    %10 = vector.broadcast %cst : f32 to vector<8x128xf32>
    %11 = arith.maximumf %9, %10 : vector<8x128xf32>
    %c0_5 = arith.constant 0 : index
    %c0_6 = arith.constant 0 : index
    %12 = vector.load %arg2[%c0_5, %c0_6] : memref<264x128xf32, #tpu.memory_space<vmem>>, vector<128x128xf32>
    %cst_7 = arith.constant dense<0.000000e+00> : vector<8x128xf32>
    %13 = tpu.matmul %11, %12, %cst_7 {dimension_numbers = #tpu.dot_dimension_numbers<[1], [0], [0], [1], [0, 0, 1, 1], [], []>} : vector<8x128xf32>, vector<128x128xf32>, vector<8x128xf32> -> vector<8x128xf32>
    %14 = vector.broadcast %3 : vector<1x128xf32> to vector<8x128xf32>
    %15 = arith.addf %13, %14 : vector<8x128xf32>
    %cst_8 = arith.constant 0.000000e+00 : f32
    %16 = vector.broadcast %cst_8 : f32 to vector<8x128xf32>
    %17 = arith.maximumf %15, %16 : vector<8x128xf32>
    %c128 = arith.constant 128 : index
    %c0_9 = arith.constant 0 : index
    %18 = vector.load %arg2[%c128, %c0_9] : memref<264x128xf32, #tpu.memory_space<vmem>>, vector<128x128xf32>
    %cst_10 = arith.constant dense<0.000000e+00> : vector<8x128xf32>
    %19 = tpu.matmul %17, %18, %cst_10 {dimension_numbers = #tpu.dot_dimension_numbers<[1], [0], [0], [1], [0, 0, 1, 1], [], []>} : vector<8x128xf32>, vector<128x128xf32>, vector<8x128xf32> -> vector<8x128xf32>
    %20 = vector.broadcast %4 : vector<1x128xf32> to vector<8x128xf32>
    %21 = arith.addf %19, %20 : vector<8x128xf32>
    %c260 = arith.constant 260 : index
    %c0_11 = arith.constant 0 : index
    %22 = vector.load %arg2[%c260, %c0_11] : memref<264x128xf32, #tpu.memory_space<vmem>>, vector<1x128xf32>
    %c261 = arith.constant 261 : index
    %c0_12 = arith.constant 0 : index
    %23 = vector.load %arg2[%c261, %c0_12] : memref<264x128xf32, #tpu.memory_space<vmem>>, vector<1x128xf32>
    %24 = vector.broadcast %0 : vector<8x1xf32> to vector<8x128xf32>
    %25 = vector.broadcast %22 : vector<1x128xf32> to vector<8x128xf32>
    %26 = arith.mulf %24, %25 : vector<8x128xf32>
    %27 = vector.broadcast %23 : vector<1x128xf32> to vector<8x128xf32>
    %28 = arith.addf %26, %27 : vector<8x128xf32>
    %29 = math.sin %28 : vector<8x128xf32>
    %cst_13 = arith.constant 4.000000e-01 : f32
    %30 = vector.broadcast %cst_13 : f32 to vector<8x128xf32>
    %31 = arith.mulf %30, %29 : vector<8x128xf32>
    %32 = arith.addf %21, %31 : vector<8x128xf32>
    %c0_14 = arith.constant 0 : index
    %c0_15 = arith.constant 0 : index
    %33 = vector.load %arg3[%c0_14, %c0_15] : memref<8x128xf32, #tpu.memory_space<vmem>>, vector<8x128xf32>
    tpu.vector_store %arg3[%c0_14, %c0_15], %32 {strides = array<i32>} : memref<8x128xf32, #tpu.memory_space<vmem>>, vector<8x128xf32>,
    return
  }
  func.func @transform_0(%arg0: i32) -> (i32, i32) {
    %c0_i32 = arith.constant 0 : i32
    %c0_i32_0 = arith.constant 0 : i32
    return %arg0, %c0_i32 : i32, i32
  }
  func.func @transform_1(%arg0: i32) -> (i32, i32) {
    %c0_i32 = arith.constant 0 : i32
    %c0_i32_0 = arith.constant 0 : i32
    %c0_i32_1 = arith.constant 0 : i32
    return %c0_i32, %c0_i32_0 : i32, i32
  }
  func.func @transform_2(%arg0: i32) -> (i32, i32) {
    %c0_i32 = arith.constant 0 : i32
    %c0_i32_0 = arith.constant 0 : i32
    return %arg0, %c0_i32 : i32, i32
  }
}

</mosaic_0001>

<llo_original>
// kernel: tpu_custom_call.1
$region0: #{tpu_custom_call.1}
  #allocation0 [shape = 'u32[]', space=smem, size = 0x4, offset = 0x4, fixed_abs, tag = 'smem constant byte address 0x4 - core index']
  #allocation1 [shape = 'u32[144,128]{1,0:T(1,128)}', space=vmem, size = 0x12000, scoped, tag = 'internal scratch']
  %s0 = inlined_call_operand.vmem [shape: f32[8,1], index: 0, kind: input, shape index: {}]
  %s1 = inlined_call_operand.hbm [shape: f32[264,128], index: 1, kind: input, shape index: {}]
  %s2 = inlined_call_operand.hbm [shape: f32[8,128], index: 2, kind: output, shape index: {}]
  %s3 = sld [smem:[#allocation0]]
  $region22: #{tpu_custom_call.1} parent=0
    _
  %s5 = ssub.s32 1, %s3
  %s6 = scalar_select 0, %s5, %s3
  $region1: #{tpu_custom_call.1} parent=0
    #allocation2 [shape = 'u8[135168]{0}', space=vmem, size = 0x21000, scoped, tag = 'input window, operand 1, single buffered']
    #allocation3 [shape = 's32[1]{0}', space=sflag, size = 0x4, scoped, tag = 'scoped memory for tpu_custom_call.1']
    #allocation4 [shape = 's32[1]{0}', space=sflag, size = 0x4, scoped, tag = 'scoped memory for tpu_custom_call.1']
    #allocation5 [shape = 'u8[4096]{0}', space=vmem, size = 0x1000, scoped, tag = 'output window, operand 0, single buffered']
    %7 = vsyncpa [#allocation3], 0
    %8 = vsyncpa [#allocation4], 0
    // Predicated region
    $region2: #{tpu_custom_call.1} parent=1 // pred_check
      _
    $region3: #{tpu_custom_call.1} parent=1 // pred_check_branch
      %10 = sbr.rel (0) target = $region5
    $region4: #{tpu_custom_call.1} parent=1 // pred_region
      _
    $region5: #{tpu_custom_call.1} parent=1 // pred_fallthru
      _
    // Predicated region
    $region6: #{tpu_custom_call.1} parent=1 // pred_check
      _
    $region7: #{tpu_custom_call.1} parent=1 // pred_check_branch
      %12 = sbr.rel (0) target = $region9
    $region8: #{tpu_custom_call.1} parent=1 // pred_region
      %s14 = ssub.s32 4224, 4224
      %15 = vsyncadd [#allocation3], %s14
      %s16 = sshll.u32 [#allocation2], 4
      %s17 = int_to_ptr.vmem [resolvable:$true] %s16
      %22 = dma.hbm_to_vmem [thread:$0]  %s1, 4224, %s17, [#allocation3], 128, 128, 8
    $region9: #{tpu_custom_call.1} parent=1 // pred_fallthru
      _
    // Predicated region
    $region10: #{tpu_custom_call.1} parent=1 // pred_check
      _
    $region11: #{tpu_custom_call.1} parent=1 // pred_check_branch
      %24 = sbr.rel (0) target = $region13
    $region12: #{tpu_custom_call.1} parent=1 // pred_region
      %25 = dma.done [#allocation3], 4224
    $region13: #{tpu_custom_call.1} parent=1 // pred_fallthru
      _
    %v26 = vld [vmem:[%s0] sm:$0xff]
    %v27 = vld [vmem:[#allocation2 + $0x100] sm:$0x1]
    %v28 = vld [vmem:[#allocation2 + $0x101] sm:$0x1]
    %v29 = vld [vmem:[#allocation2 + $0x102] sm:$0x1]
    %v30 = vld [vmem:[#allocation2 + $0x103] sm:$0x1]
    %32 = vset.pattern.permute.xlu0 0
    %33 = vperm.xlu0 %32, %v26
    %v34 = vpop.permute.xlu0 %33
    %v36 = vlaneseq
    %v37 = vshrl.u32 %v36, 7
    %v38 = vsub.s32 0, %v37
    %v39 = vrot.slane %v27, %v38
    %v40 = vmul.f32 %v34, %v39
    %v41 = vlaneseq
    %v42 = vshrl.u32 %v41, 7
    %v43 = vsub.s32 0, %v42
    %v44 = vrot.slane %v28, %v43
    %v45 = vadd.f32 %v40, %v44
    %v46 = vmax.f32 %v45, 0.0
    %v47 = vld [vmem:[#allocation2] sm:$0xff]
    %v48 = vld [vmem:[#allocation2 + $0x8] sm:$0xff]
    %v49 = vld [vmem:[#allocation2 + $0x10] sm:$0xff]
    %v50 = vld [vmem:[#allocation2 + $0x18] sm:$0xff]
    %v51 = vld [vmem:[#allocation2 + $0x20] sm:$0xff]
    %v52 = vld [vmem:[#allocation2 + $0x28] sm:$0xff]
    %v53 = vld [vmem:[#allocation2 + $0x30] sm:$0xff]
    %v54 = vld [vmem:[#allocation2 + $0x38] sm:$0xff]
    %v55 = vld [vmem:[#allocation2 + $0x40] sm:$0xff]
    %v56 = vld [vmem:[#allocation2 + $0x48] sm:$0xff]
    %v57 = vld [vmem:[#allocation2 + $0x50] sm:$0xff]
    %v58 = vld [vmem:[#allocation2 + $0x58] sm:$0xff]
    %v59 = vld [vmem:[#allocation2 + $0x60] sm:$0xff]
    %v60 = vld [vmem:[#allocation2 + $0x68] sm:$0xff]
    %v61 = vld [vmem:[#allocation2 + $0x70] sm:$0xff]
    %v62 = vld [vmem:[#allocation2 + $0x78] sm:$0xff]
    %v63 = vlaneseq
    %v64 = vshrl.u32 %v63, 7
    %v65 = vsub.s32 0, %v64
    %v66 = vrot.slane %v29, %v65
    %67 = vmatprep.subr.mxu0 0.0
    %68 = vmatpush1.msra.mxu0 %v47
    %69 = vmatprep.subr.mxu0 0.0
    %70 = vmatpush1.msra.mxu0 %v48
    %71 = vmatprep.subr.mxu0 0.0
    %72 = vmatpush1.msra.mxu0 %v49
    %73 = vmatprep.subr.mxu0 0.0
    %74 = vmatpush1.msra.mxu0 %v50
    %75 = vmatprep.subr.mxu0 0.0
    %76 = vmatpush1.msra.mxu0 %v51
    %77 = vmatprep.subr.mxu0 0.0
    %78 = vmatpush1.msra.mxu0 %v52
    %79 = vmatprep.subr.mxu0 0.0
    %80 = vmatpush1.msra.mxu0 %v53
    %81 = vmatprep.subr.mxu0 0.0
    %82 = vmatpush1.msra.mxu0 %v54
    %83 = vmatprep.subr.mxu0 0.0
    %84 = vmatpush1.msra.mxu0 %v55
    %85 = vmatprep.subr.mxu0 0.0
    %86 = vmatpush1.msra.mxu0 %v56
    %87 = vmatprep.subr.mxu0 0.0
    %88 = vmatpush1.msra.mxu0 %v57
    %89 = vmatprep.subr.mxu0 0.0
    %90 = vmatpush1.msra.mxu0 %v58
    %91 = vmatprep.subr.mxu0 0.0
    %92 = vmatpush1.msra.mxu0 %v59
    %93 = vmatprep.subr.mxu0 0.0
    %94 = vmatpush1.msra.mxu0 %v60
    %95 = vmatprep.subr.mxu0 0.0
    %96 = vmatpush1.msra.mxu0 %v61
    %97 = vmatprep.subr.mxu0 0.0
    %98 = vmatpush1.msra.mxu0 %v62
    %99 = vmatprep.subr.mxu0 0.0
    %100 = vmatpush1.msra.mxu0 0.0
    %101 = vmatprep.subr.mxu0 0.0
    %102 = vmatpush1.msra.mxu0 0.0
    %103 = vmatprep.subr.mxu0 0.0
    %104 = vmatpush1.msra.mxu0 0.0
    %105 = vmatprep.subr.mxu0 0.0
    %106 = vmatpush1.msra.mxu0 0.0
    %107 = vmatprep.subr.mxu0 0.0
    %108 = vmatpush1.msra.mxu0 0.0
    %109 = vmatprep.subr.mxu0 0.0
    %110 = vmatpush1.msra.mxu0 0.0
    %111 = vmatprep.subr.mxu0 0.0
    %112 = vmatpush1.msra.mxu0 0.0
    %113 = vmatprep.subr.mxu0 0.0
    %114 = vmatpush1.msra.mxu0 0.0
    %115 = vmatprep.subr.mxu0 0.0
    %116 = vmatpush1.msra.mxu0 0.0
    %117 = vmatprep.subr.mxu0 0.0
    %118 = vmatpush1.msra.mxu0 0.0
    %119 = vmatprep.subr.mxu0 0.0
    %120 = vmatpush1.msra.mxu0 0.0
    %121 = vmatprep.subr.mxu0 0.0
    %122 = vmatpush1.msra.mxu0 0.0
    %123 = vmatprep.subr.mxu0 0.0
    %124 = vmatpush1.msra.mxu0 0.0
    %125 = vmatprep.subr.mxu0 0.0
    %126 = vmatpush1.msra.mxu0 0.0
    %127 = vmatprep.subr.mxu0 0.0
    %128 = vmatpush1.msra.mxu0 0.0
    %129 = vmatprep.subr.mxu0 0.0
    %130 = vmatpush1.msra.mxu0 0.0
    %131 = vmatprep.mubr.f32.mxu0 0.0
    %132 = vmatmul.mubr.f32.gmra.mrb[0].mxu0 %v46
    %v133 = vpop.f32.mrb[0].mxu0
    %v134 = vadd.f32 %v66, %v133
    %v135 = vpop.f32.mrb[0].mxu0
    %136 = vdwg.mxu0
    %v137 = vmax.f32 %v134, 0.0
    %v138 = vld [vmem:[#allocation2 + $0x80] sm:$0xff]
    %v139 = vld [vmem:[#allocation2 + $0x88] sm:$0xff]
    %v140 = vld [vmem:[#allocation2 + $0x90] sm:$0xff]
    %v141 = vld [vmem:[#allocation2 + $0x98] sm:$0xff]
    %v142 = vld [vmem:[#allocation2 + $0xa0] sm:$0xff]
    %v143 = vld [vmem:[#allocation2 + $0xa8] sm:$0xff]
    %v144 = vld [vmem:[#allocation2 + $0xb0] sm:$0xff]
    %v145 = vld [vmem:[#allocation2 + $0xb8] sm:$0xff]
    %v146 = vld [vmem:[#allocation2 + $0xc0] sm:$0xff]
    %v147 = vld [vmem:[#allocation2 + $0xc8] sm:$0xff]
    %v148 = vld [vmem:[#allocation2 + $0xd0] sm:$0xff]
    %v149 = vld [vmem:[#allocation2 + $0xd8] sm:$0xff]
    %v150 = vld [vmem:[#allocation2 + $0xe0] sm:$0xff]
    %v151 = vld [vmem:[#allocation2 + $0xe8] sm:$0xff]
    %v152 = vld [vmem:[#allocation2 + $0xf0] sm:$0xff]
    %v153 = vld [vmem:[#allocation2 + $0xf8] sm:$0xff]
    %v154 = vlaneseq
    %v155 = vshrl.u32 %v154, 7
    %v156 = vsub.s32 0, %v155
    %v157 = vrot.slane %v30, %v156
    %158 = vmatprep.subr.mxu0 0.0
    %159 = vmatpush1.msra.mxu0 %v138
    %160 = vmatprep.subr.mxu0 0.0
    %161 = vmatpush1.msra.mxu0 %v139
    %162 = vmatprep.subr.mxu0 0.0
    %163 = vmatpush1.msra.mxu0 %v140
    %164 = vmatprep.subr.mxu0 0.0
    %165 = vmatpush1.msra.mxu0 %v141
    %166 = vmatprep.subr.mxu0 0.0
    %167 = vmatpush1.msra.mxu0 %v142
    %168 = vmatprep.subr.mxu0 0.0
    %169 = vmatpush1.msra.mxu0 %v143
    %170 = vmatprep.subr.mxu0 0.0
    %171 = vmatpush1.msra.mxu0 %v144
    %172 = vmatprep.subr.mxu0 0.0
    %173 = vmatpush1.msra.mxu0 %v145
    %174 = vmatprep.subr.mxu0 0.0
    %175 = vmatpush1.msra.mxu0 %v146
    %176 = vmatprep.subr.mxu0 0.0
    %177 = vmatpush1.msra.mxu0 %v147
    %178 = vmatprep.subr.mxu0 0.0
    %179 = vmatpush1.msra.mxu0 %v148
    %180 = vmatprep.subr.mxu0 0.0
    %181 = vmatpush1.msra.mxu0 %v149
    %182 = vmatprep.subr.mxu0 0.0
    %183 = vmatpush1.msra.mxu0 %v150
    %184 = vmatprep.subr.mxu0 0.0
    %185 = vmatpush1.msra.mxu0 %v151
    %186 = vmatprep.subr.mxu0 0.0
    %187 = vmatpush1.msra.mxu0 %v152
    %188 = vmatprep.subr.mxu0 0.0
    %189 = vmatpush1.msra.mxu0 %v153
    %190 = vmatprep.subr.mxu0 0.0
    %191 = vmatpush1.msra.mxu0 0.0
    %192 = vmatprep.subr.mxu0 0.0
    %193 = vmatpush1.msra.mxu0 0.0
    %194 = vmatprep.subr.mxu0 0.0
    %195 = vmatpush1.msra.mxu0 0.0
    %196 = vmatprep.subr.mxu0 0.0
    %197 = vmatpush1.msra.mxu0 0.0
    %198 = vmatprep.subr.mxu0 0.0
    %199 = vmatpush1.msra.mxu0 0.0
    %200 = vmatprep.subr.mxu0 0.0
    %201 = vmatpush1.msra.mxu0 0.0
    %202 = vmatprep.subr.mxu0 0.0
    %203 = vmatpush1.msra.mxu0 0.0
    %204 = vmatprep.subr.mxu0 0.0
    %205 = vmatpush1.msra.mxu0 0.0
    %206 = vmatprep.subr.mxu0 0.0
    %207 = vmatpush1.msra.mxu0 0.0
    %208 = vmatprep.subr.mxu0 0.0
    %209 = vmatpush1.msra.mxu0 0.0
    %210 = vmatprep.subr.mxu0 0.0
    %211 = vmatpush1.msra.mxu0 0.0
    %212 = vmatprep.subr.mxu0 0.0
    %213 = vmatpush1.msra.mxu0 0.0
    %214 = vmatprep.subr.mxu0 0.0
    %215 = vmatpush1.msra.mxu0 0.0
    %216 = vmatprep.subr.mxu0 0.0
    %217 = vmatpush1.msra.mxu0 0.0
    %218 = vmatprep.subr.mxu0 0.0
    %219 = vmatpush1.msra.mxu0 0.0
    %220 = vmatprep.subr.mxu0 0.0
    %221 = vmatpush1.msra.mxu0 0.0
    %222 = vmatprep.mubr.f32.mxu0 0.0
    %223 = vmatmul.mubr.f32.gmra.mrb[0].mxu0 %v137
    %v224 = vpop.f32.mrb[0].mxu0
    %v225 = vadd.f32 %v157, %v224
    %v226 = vpop.f32.mrb[0].mxu0
    %227 = vdwg.mxu0
    %v228 = vld [vmem:[#allocation2 + $0x104] sm:$0x1]
    %v229 = vld [vmem:[#allocation2 + $0x105] sm:$0x1]
    %v230 = vlaneseq
    %v231 = vshrl.u32 %v230, 7
    %v232 = vsub.s32 0, %v231
    %v233 = vrot.slane %v228, %v232
    %v234 = vmul.f32 %v34, %v233
    %v235 = vlaneseq
    %v236 = vshrl.u32 %v235, 7
    %v237 = vsub.s32 0, %v236
    %v238 = vrot.slane %v229, %v237
    %v239 = vadd.f32 %v234, %v238
    %v240 = vand.u32 2147483647, %v239
    %vm241 = vcmp.le.f32.partialorder %v240, 0.7853982
    %vm242 = vcmp.lt.s32.totalorder %v239, 0
    %v243 = vand.u32 %v239, 2139095040
    %v244 = vshrl.u32 %v243, 23
    %v245 = vsub.s32 %v244, 127
    %v246 = vand.u32 2147483647, %v239
    %v247 = vand.u32 %v246, 8388607
    %v248 = vor.u32 %v247, 8388608
    %v249 = vsub.s32 0, %v248
    %v250 = vadd.s32 %v245, 1
    %vm251 = vcmp.gt.s32.totalorder %v250, 0
    %v252 = vsel %vm251, %v250, 0
    %v253 = vshrl.u32 %v252, 5
    %v254 = vand.u32 %v252, 31
    %v255 = vsub.s32 32, %v254
    %v256 = vshrl.u32 683565275, %v255
    %v257 = vshll.u32 683565275, %v254
    %v258 = vshrl.u32 2475754826, %v255
    %v259 = vor.u32 %v257, %v258
    %v260 = vshll.u32 2475754826, %v254
    %v261 = vshrl.u32 2131351028, %v255
    %v262 = vor.u32 %v260, %v261
    %v263 = vshll.u32 2131351028, %v254
    %v264 = vshrl.u32 2102212464, %v255
    %v265 = vor.u32 %v263, %v264
    %v266 = vshll.u32 2102212464, %v254
    %v267 = vshrl.u32 920167782, %v255
    %v268 = vor.u32 %v266, %v267
    %v269 = vshll.u32 920167782, %v254
    %v270 = vshrl.u32 1326507024, %v255
    %v271 = vor.u32 %v269, %v270
    %vm272 = vcmp.lt.s32.totalorder %v253, 1
    %vm273 = vcmp.lt.s32.totalorder %v253, 2
    %vm274 = vcmp.lt.s32.totalorder %v253, 3
    %vm275 = vcmp.lt.s32.totalorder %v253, 4
    %v276 = vsel %vm272, %v256, %v259
    %v277 = vsel %vm275, %v265, 2102212464
    %v278 = vsel %vm274, %v262, %v277
    %v279 = vsel %vm273, %v276, %v278
    %v280 = vsel %vm272, %v259, %v262
    %v281 = vsel %vm275, %v268, 920167782
    %v282 = vsel %vm274, %v265, %v281
    %v283 = vsel %vm273, %v280, %v282
    %v284 = vsel %vm272, %v262, %v265
    %v285 = vsel %vm275, %v271, 1326507024
    %v286 = vsel %vm274, %v268, %v285
    %v287 = vsel %vm273, %v284, %v286
    %v288 = vshll.u32 %v248, 8
    %v289 = vmul.u32.u64.compose %v288, %v287
    %v290 = vextract.low.u32 %v289
    %v291 = vextract.high.u32 %v289
    %v292 = vmul.u32.u64.compose %v288, %v283
    %v293 = vextract.low.u32 %v292
    %v294 = vextract.high.u32 %v292
    %v295 = vmul.u32 %v288, %v279
    %v296 = vadd.s32 %v291, %v293
    %vm297 = vc.u32 %v291, %v293
    %v298 = vadd.s32 %v294, 1
    %v299 = vsel %vm297, %v298, %v294
    %v300 = vadd.s32 %v295, %v299
    %v301 = vadd.s32 %v300, 536870912
    %v302 = vshrl.u32 %v301, 30
    %v303 = vshll.u32 %v302, 30
    %v304 = vsub.s32 %v300, %v303
    %vm305 = vcmp.lt.s32.totalorder %v304, 0
    %v306 = vsub.s32 0, %v304
    %v307 = vsel %vm305, %v306, %v304
    %v308 = vclz %v307
    %v309 = vsub.s32 %v308, 2
    %vm310 = vcmp.gt.s32.totalorder 0, %v309
    %v311 = vsel %vm310, 0, %v309
    %v312 = vsub.s32 32, %v311
    %v313 = vshll.u32 %v304, %v311
    %v314 = vshrl.u32 %v296, %v312
    %v315 = vor.u32 %v313, %v314
    %v316 = vsub.s32 4294967266, %v311
    %v317 = vadd.s32 %v316, 127
    %v318 = vshll.u32 %v317, 23
    %v319 = vor.u32 4788187, %v318
    %v320 = vand.u32 2147483647, %v319
    %v322 = vcvt.s32.f32 %v315
    %v323 = vmul.f32 %v322, %v320
    %v324 = vxor.u32 %v323, 2147483648
    %v325 = vsel %vm242, %v324, %v323
    %v326 = vsub.s32 4, %v302
    %v327 = vsel %vm242, %v326, %v302
    %v328 = vsel %vm241, %v239, %v325
    %v329 = vsel %vm241, 0, %v327
    %v330 = vcosq.f32.pop %v328
    %v331 = vsinq.f32.pop %v328
    %vm332 = vweird.f32 %v239
    %v333 = vadd.s32 %v329, 3
    %v334 = vand.u32 %v333, 3
    %vm335 = vcmp.lt.s32.totalorder %v334, 2
    %vm336 = vcmp.eq.s32.totalorder %v334, 0
    %v337 = vxor.u32 %v331, 2147483648
    %v338 = vsel %vm336, %v330, %v337
    %vm339 = vcmp.eq.s32.totalorder %v334, 2
    %v340 = vxor.u32 %v330, 2147483648
    %v341 = vsel %vm339, %v340, %v331
    %v342 = vsel %vm335, %v338, %v341
    %v343 = vsel %vm332, nan, %v342
    %v344 = vmul.f32 %v343, 0.4
    %v345 = vadd.f32 %v225, %v344
    %346 = vst [vmem:[#allocation5] sm:$0xff] %v345
    // Predicated region
    $region14: #{tpu_custom_call.1} parent=1 // pred_check
      _
    $region15: #{tpu_custom_call.1} parent=1 // pred_check_branch
      %348 = sbr.rel (0) target = $region17
    $region16: #{tpu_custom_call.1} parent=1 // pred_region
      %s350 = ssub.s32 128, 128
      %351 = vsyncadd [#allocation4], %s350
      %s353 = sshll.u32 [#allocation5], 4
      %s354 = int_to_ptr.vmem [resolvable:$true] %s353
      %356 = dma.vmem_to_hbm [thread:$0]  %s354, 128, %s2, [#allocation4]
    $region17: #{tpu_custom_call.1} parent=1 // pred_fallthru
      _
    // Predicated region
    $region18: #{tpu_custom_call.1} parent=1 // pred_check
      _
    $region19: #{tpu_custom_call.1} parent=1 // pred_check_branch
      %358 = sbr.rel (0) target = $region21
    $region20: #{tpu_custom_call.1} parent=1 // pred_region
      %359 = dma.done [#allocation4], 128
    $region21: #{tpu_custom_call.1} parent=1 // pred_fallthru
      _
    %360 = vsyncpa [#allocation3], 1
    %361 = vsyncpa [#allocation4], 1

</llo_original>
